<compile_context>
chip_gen: v6e
topology: v6e:2x2x1
jax: 0.10.0
libtpu: 0.0.40
codegen_flags: <defaults>
</compile_context>

<pallas_src>
import math

import jax
import jax.numpy as jnp
from jax import lax
from jax.experimental import pallas as pl
from jax.experimental.pallas import tpu as pltpu
from jax.scipy.linalg import solve_triangular


def _round_up(a, b):
    return (a + b - 1) // b * b


# ---------------------------------------------------------------------------
# Kernels
# ---------------------------------------------------------------------------
def _mm_bias_kernel(x_ref, w_ref, b_ref, o_ref):
    """One row tile, whole feature dim resident:  o = x @ W + b (f32 acc)."""
    acc = jnp.dot(
        x_ref[...].astype(w_ref.dtype),
        w_ref[...],
        preferred_element_type=jnp.float32,
    )
    o_ref[...] = (acc + b_ref[...]).astype(o_ref.dtype)


def _make_mm_bias_acc_kernel(nk, k_rem, tk):
    """(i, j, k)-tiled matmul + bias with an f32 VMEM accumulator."""

    def kernel(x_ref, w_ref, b_ref, o_ref, acc_ref):
        k = pl.program_id(2)

        @pl.when(k == 0)
        def _():
            acc_ref[...] = jnp.zeros_like(acc_ref)

        x_blk = x_ref[...]
        if k_rem:
            # Last K block of x is a ragged edge: zero the out-of-range lanes so
            # uninitialized VMEM never reaches the accumulator (W is zero-padded
            # along K in the wrapper).
            col = lax.broadcasted_iota(jnp.int32, x_blk.shape, 1)
            lim = jnp.where(k == nk - 1, k_rem, tk)
            x_blk = jnp.where(col < lim, x_blk, jnp.zeros_like(x_blk))

        acc_ref[...] += jnp.dot(
            x_blk.astype(w_ref.dtype), w_ref[...],
            preferred_element_type=jnp.float32,
        )

        @pl.when(k == nk - 1)
        def _():
            o_ref[...] = (acc_ref[...] + b_ref[...]).astype(o_ref.dtype)

    return kernel


# ---------------------------------------------------------------------------
# Wrapper helpers
# ---------------------------------------------------------------------------
def _vmem_budget_bytes():
    cap = 128 * 1024 * 1024  # v5e / v6e physical VMEM
    try:
        info = pltpu.get_tpu_info()
        cap = int(getattr(info, "vmem_capacity_bytes", cap)) or cap
    except Exception:
        pass
    # ~70% of physical: ~44 MiB on v7x (64 MiB), ~90 MiB on v5e/v6e (128 MiB),
    # leaving headroom for Mosaic internal scratch / semaphores.
    return int(cap * 0.70)


def _pick_tm(rows, target):
    """Row-tile size: balanced tile count (no ~2x ballooning on the last tile)
    and >= 2 grid steps when possible so v7x megacore keeps both TCs busy."""
    nsteps = pl.cdiv(rows, max(8, target))
    if nsteps < 2 and rows > 8:
        nsteps = 2
    nsteps = max(1, min(nsteps, pl.cdiv(rows, 8)))
    tm = _round_up(pl.cdiv(rows, nsteps), 8)
    if rows < tm:
        tm = rows  # single full-extent block (avoids an oversized edge block)
    return tm


# ---------------------------------------------------------------------------
# Public entry point
# ---------------------------------------------------------------------------
def householder_linear(x, vectors, bias=None, *, compute_dtype=None, tile_rows=None):
    """y = x @ (H_1 H_2 ... H_m) + bias, H_i = I - 2 v_i v_i^T (v_i normalized).

    `compute_dtype` sets the MXU operand dtype (default: x.dtype). Accumulation
    is always f32.  For best end-to-end performance jit this wrapper so the
    (contiguous, data-movement-free) reshapes fuse with neighboring ops.
    """
    m, dim = vectors.shape
    assert x.shape[-1] == dim
    out_dtype = x.dtype
    lead = x.shape[:-1]
    n = math.prod(lead)
    if n == 0:
        return jnp.zeros(x.shape, out_dtype)

    cdt = jnp.dtype(compute_dtype) if compute_dtype is not None else jnp.dtype(x.dtype)

    # ---- fold the reflection chain once: compact WY, O(1) sequential depth ----
    # W = H_1 ... H_m = I - V T V^T with V = vn^T and
    # T^-1 = 0.5*I + triu(V^T V, 1)  (upper triangular).
    vn = vectors.astype(jnp.float32)
    vn = vn * lax.rsqrt(jnp.sum(vn * vn, axis=1, keepdims=True))
    t_inv = 0.5 * jnp.eye(m, dtype=jnp.float32) + jnp.triu(vn @ vn.T, k=1)
    tvt = solve_triangular(t_inv, vn, lower=False)            # T @ V^T, (m, dim)
    w = jnp.eye(dim, dtype=jnp.float32) - vn.T @ tvt          # (dim, dim), orthogonal
    # TODO(synk): for m << dim, skip the dense W and run the compact-WY form
    # y = x - ((x V) T) V^T + b as two skinny matmuls inside the kernel.

    b = jnp.zeros((dim,), jnp.float32) if bias is None else bias.astype(jnp.float32)

    # ---- small-dim lane packing: g rows per 128-lane group (no x/out padding) --
    g = 1
    if dim < 128 and 128 % dim == 0 and n % (128 // dim) == 0:
        g = 128 // dim
    feat = g * dim
    rows = n // g
    x2 = x.reshape(rows, feat)            # contiguous reshape -> no data movement
    if g > 1:
        w = jnp.kron(jnp.eye(g, dtype=jnp.float32), w)   # block-diagonal (128, 128)
        b = jnp.tile(b, g)
    w = w.astype(cdt)
    b2 = b.reshape(1, feat)

    xsz = jnp.dtype(x.dtype).itemsize
    osz = jnp.dtype(out_dtype).itemsize
    wsz = jnp.dtype(cdt).itemsize
    budget = _vmem_budget_bytes()

    # Larger row tiles for small feature dims (HBM-bound regime).
    if tile_rows is None:
        tile_rows = 2048 if feat <= 512 else 512

    # ------------------ whole-W path (W + one row tile fit VMEM) ----------------
    def est_whole(tm_):
        # 2x double-buffered x/out tiles, W budgeted conservatively at 2 buffers.
        return (2 * tm_ * feat * xsz + 2 * tm_ * feat * osz
                + 2 * feat * feat * wsz + 2 * feat * 4)

    tm = _pick_tm(rows, tile_rows)
    floor = min(tm, 256)   # don't collapse tm below 256: switch to K/N tiling instead
    while est_whole(tm) > budget and tm > floor:
        new_tm = max(floor, _round_up(tm // 2, 8))
        if new_tm == tm:
            break
        tm = new_tm

    if est_whole(tm) <= budget:
        grid = (pl.cdiv(rows, tm),)

        def call(single_buf_w):
            # W / bias are grid-invariant: a single VMEM buffer is enough.
            wb = dict(pipeline_mode=pl.Buffered(1)) if single_buf_w else {}
            return pl.pallas_call(
                _mm_bias_kernel,
                out_shape=jax.ShapeDtypeStruct((rows, feat), out_dtype),
                grid=grid,
                in_specs=[
                    pl.BlockSpec((tm, feat), lambda i: (i, 0)),
                    pl.BlockSpec((feat, feat), lambda i: (0, 0), **wb),
                    pl.BlockSpec((1, feat), lambda i: (0, 0), **wb),
                ],
                out_specs=pl.BlockSpec((tm, feat), lambda i: (i, 0)),
                compiler_params=pltpu.CompilerParams(
                    dimension_semantics=("parallel",),
                    vmem_limit_bytes=budget,
                ),
            )(x2, w, b2)

        try:
            out = call(True)
        except Exception:
            out = call(False)   # fallback if pipeline_mode=Buffered(1) is rejected
        return out.reshape(*lead, dim)

    # ------------- (i, j, k)-tiled path for large feature dims ------------------
    # Keeps tm / tn large instead of collapsing the row tile when W no longer
    # fits VMEM (mandatory on v7x's 64 MiB for dim >~ 1.4k).
    tk = tn = 256                      # MXU-friendly on v5e/v6e/v7x
    nk = pl.cdiv(feat, tk)
    nj = pl.cdiv(feat, tn)
    k_rem = feat % tk
    if k_rem:
        # Zero-pad W along K only (tiny vs. x traffic) so the masked ragged K
        # edge of x never multiplies uninitialized data.  x / out stay unpadded.
        w = jnp.zeros((nk * tk, feat), cdt).at[:feat, :].set(w)

    def est_tiled(tm_):
        return (2 * tm_ * tk * xsz + 2 * tm_ * tn * osz
                + 2 * tk * tn * wsz + 2 * tn * 4 + tm_ * tn * 4)

    tm = _pick_tm(rows, min(tile_rows, 1024))
    while est_tiled(tm) > budget and tm > 8:
        new_tm = max(8, _round_up(tm // 2, 8))
        if new_tm == tm:
            break
        tm = new_tm

    out = pl.pallas_call(
        _make_mm_bias_acc_kernel(nk, k_rem, tk),
        out_shape=jax.ShapeDtypeStruct((rows, feat), out_dtype),
        grid=(pl.cdiv(rows, tm), nj, nk),
        in_specs=[
            pl.BlockSpec((tm, tk), lambda i, j, k: (i, k)),
            pl.BlockSpec((tk, tn), lambda i, j, k: (k, j)),
            pl.BlockSpec((1, tn), lambda i, j, k: (0, j)),
        ],
        out_specs=pl.BlockSpec((tm, tn), lambda i, j, k: (i, j)),
        scratch_shapes=[pltpu.VMEM((tm, tn), jnp.float32)],
        compiler_params=pltpu.CompilerParams(
            dimension_semantics=("parallel", "parallel", "arbitrary"),
            vmem_limit_bytes=budget,
        ),
    )(x2, w, b2)
    return out.reshape(*lead, dim)


# ---------------------------------------------------------------------------
# Pure-JAX reference mirroring the PyTorch forward (strictly sequential)
# ---------------------------------------------------------------------------
def householder_linear_ref(x, vectors, bias):
    vn = vectors / jnp.linalg.norm(vectors, axis=1, keepdims=True)
    out = x
    for i in range(vectors.shape[0]):
        v = vn[i]
        proj = jnp.einsum("...d,d->...", out, v)
        out = out - 2.0 * proj[..., None] * v
    return out + bias if bias is not None else out


if __name__ == "__main__":
    dim = 32
    num_reflections = dim      # module default: m = dim
    batch, seq = 2, 8

    key = jax.random.PRNGKey(0)
    k_x, k_v, k_b = jax.random.split(key, 3)

    vectors = jax.random.normal(k_v, (num_reflections, dim), jnp.float32) * 0.01
    bias = 0.1 * jax.random.normal(k_b, (dim,), jnp.float32)
    x = jax.random.normal(k_x, (batch, seq, dim), jnp.float32)

    # Main path: dim=32 -> 4 rows packed per 128-lane tile, f32 MXU operands.
    y = jax.block_until_ready(householder_linear(x, vectors, bias))
    y_ref = householder_linear_ref(x, vectors, bias)
    assert y.shape == x.shape
    assert jnp.allclose(y, y_ref, atol=1e-3, rtol=1e-3), "f32 packed path mismatch"

    # Unpacked path (dim does not divide 128, m < dim), full-extent feature block.
    dim2, m2 = 80, 16
    v2 = jax.random.normal(k_v, (m2, dim2), jnp.float32) * 0.01
    b2 = 0.1 * jax.random.normal(k_b, (dim2,), jnp.float32)
    x2 = jax.random.normal(k_x, (batch, seq, dim2), jnp.float32)
    y2 = jax.block_until_ready(householder_linear(x2, v2, b2))
    y2_ref = householder_linear_ref(x2, v2, b2)
    assert jnp.allclose(y2, y2_ref, atol=1e-3, rtol=1e-3), "f32 unpacked path mismatch"

    # bf16 MXU operands (W cast in wrapper, x cast in-kernel), f32 accumulation.
    y3 = jax.block_until_ready(
        householder_linear(x, vectors, bias, compute_dtype=jnp.bfloat16))
    assert jnp.allclose(y3, y_ref, atol=5e-2, rtol=5e-2), "bf16 path mismatch"

    print("KERNEL_OK")
</pallas_src>

<mosaic_0001>
module attributes {stable_mosaic.version = 11 : i64} {
  func.func @_mm_bias_kernel(%arg0: i32, %arg1: memref<4x128xf32, #tpu.memory_space<vmem>>, %arg2: memref<128x128xf32, #tpu.memory_space<vmem>>, %arg3: memref<1x128xf32, #tpu.memory_space<vmem>>, %arg4: memref<4x128xf32, #tpu.memory_space<vmem>>) attributes {dimension_semantics = [#tpu.dimension_semantics<parallel>], iteration_bounds = array<i64: 1>, scalar_prefetch = 0 : i64, scratch_operands = 0 : i64, tpu.core_type = #tpu.core_type<tc>, window_params = [{transform_indices = @transform_0, window_bounds = array<i64: 4, 128>}, {pipeline_mode = #tpu.pipeline_mode<synchronous>, transform_indices = @transform_1, window_bounds = array<i64: 128, 128>}, {pipeline_mode = #tpu.pipeline_mode<synchronous>, transform_indices = @transform_2, window_bounds = array<i64: 1, 128>}, {transform_indices = @transform_3, window_bounds = array<i64: 4, 128>}]} {
    %c0 = arith.constant 0 : index
    %c0_0 = arith.constant 0 : index
    %0 = vector.load %arg1[%c0, %c0_0] : memref<4x128xf32, #tpu.memory_space<vmem>>, vector<4x128xf32>
    %c0_1 = arith.constant 0 : index
    %c0_2 = arith.constant 0 : index
    %1 = vector.load %arg2[%c0_1, %c0_2] : memref<128x128xf32, #tpu.memory_space<vmem>>, vector<128x128xf32>
    %cst = arith.constant dense<0.000000e+00> : vector<4x128xf32>
    %2 = tpu.matmul %0, %1, %cst {dimension_numbers = #tpu.dot_dimension_numbers<[1], [0], [0], [1], [0, 0, 1, 1], [], []>} : vector<4x128xf32>, vector<128x128xf32>, vector<4x128xf32> -> vector<4x128xf32>
    %c0_3 = arith.constant 0 : index
    %c0_4 = arith.constant 0 : index
    %3 = vector.load %arg3[%c0_3, %c0_4] : memref<1x128xf32, #tpu.memory_space<vmem>>, vector<1x128xf32>
    %4 = vector.broadcast %3 : vector<1x128xf32> to vector<4x128xf32>
    %5 = arith.addf %2, %4 : vector<4x128xf32>
    %c0_5 = arith.constant 0 : index
    %c0_6 = arith.constant 0 : index
    %6 = vector.load %arg4[%c0_5, %c0_6] : memref<4x128xf32, #tpu.memory_space<vmem>>, vector<4x128xf32>
    tpu.vector_store %arg4[%c0_5, %c0_6], %5 {strides = array<i32>} : memref<4x128xf32, #tpu.memory_space<vmem>>, vector<4x128xf32>,
    return
  }
  func.func @transform_0(%arg0: i32) -> (i32, i32) {
    %c0_i32 = arith.constant 0 : i32
    %c0_i32_0 = arith.constant 0 : i32
    return %arg0, %c0_i32 : i32, i32
  }
  func.func @transform_1(%arg0: i32) -> (i32, i32) {
    %c0_i32 = arith.constant 0 : i32
    %c0_i32_0 = arith.constant 0 : i32
    %c0_i32_1 = arith.constant 0 : i32
    return %c0_i32, %c0_i32_0 : i32, i32
  }
  func.func @transform_2(%arg0: i32) -> (i32, i32) {
    %c0_i32 = arith.constant 0 : i32
    %c0_i32_0 = arith.constant 0 : i32
    %c0_i32_1 = arith.constant 0 : i32
    return %c0_i32, %c0_i32_0 : i32, i32
  }
  func.func @transform_3(%arg0: i32) -> (i32, i32) {
    %c0_i32 = arith.constant 0 : i32
    %c0_i32_0 = arith.constant 0 : i32
    return %arg0, %c0_i32 : i32, i32
  }
}

module attributes {stable_mosaic.version = 11 : i64} {
  func.func @_mm_bias_kernel(%arg0: i32, %arg1: memref<4x128xf32, #tpu.memory_space<vmem>>, %arg2: memref<128x128xf32, #tpu.memory_space<vmem>>, %arg3: memref<1x128xf32, #tpu.memory_space<vmem>>, %arg4: memref<4x128xf32, #tpu.memory_space<vmem>>) attributes {dimension_semantics = [#tpu.dimension_semantics<parallel>], iteration_bounds = array<i64: 1>, scalar_prefetch = 0 : i64, scratch_operands = 0 : i64, tpu.core_type = #tpu.core_type<tc>, window_params = [{transform_indices = @transform_0, window_bounds = array<i64: 4, 128>}, {pipeline_mode = #tpu.pipeline_mode<synchronous>, transform_indices = @transform_1, window_bounds = array<i64: 128, 128>}, {pipeline_mode = #tpu.pipeline_mode<synchronous>, transform_indices = @transform_2, window_bounds = array<i64: 1, 128>}, {transform_indices = @transform_3, window_bounds = array<i64: 4, 128>}]} {
    %c0 = arith.constant 0 : index
    %c0_0 = arith.constant 0 : index
    %0 = vector.load %arg1[%c0, %c0_0] : memref<4x128xf32, #tpu.memory_space<vmem>>, vector<4x128xf32>
    %c0_1 = arith.constant 0 : index
    %c0_2 = arith.constant 0 : index
    %1 = vector.load %arg2[%c0_1, %c0_2] : memref<128x128xf32, #tpu.memory_space<vmem>>, vector<128x128xf32>
    %cst = arith.constant dense<0.000000e+00> : vector<4x128xf32>
    %2 = tpu.matmul %0, %1, %cst {dimension_numbers = #tpu.dot_dimension_numbers<[1], [0], [0], [1], [0, 0, 1, 1], [], []>} : vector<4x128xf32>, vector<128x128xf32>, vector<4x128xf32> -> vector<4x128xf32>
    %c0_3 = arith.constant 0 : index
    %c0_4 = arith.constant 0 : index
    %3 = vector.load %arg3[%c0_3, %c0_4] : memref<1x128xf32, #tpu.memory_space<vmem>>, vector<1x128xf32>
    %4 = vector.broadcast %3 : vector<1x128xf32> to vector<4x128xf32>
    %5 = arith.addf %2, %4 : vector<4x128xf32>
    %c0_5 = arith.constant 0 : index
    %c0_6 = arith.constant 0 : index
    %6 = vector.load %arg4[%c0_5, %c0_6] : memref<4x128xf32, #tpu.memory_space<vmem>>, vector<4x128xf32>
    tpu.vector_store %arg4[%c0_5, %c0_6], %5 {strides = array<i32>} : memref<4x128xf32, #tpu.memory_space<vmem>>, vector<4x128xf32>,
    return
  }
  func.func @transform_0(%arg0: i32) -> (i32, i32) {
    %c0_i32 = arith.constant 0 : i32
    %c0_i32_0 = arith.constant 0 : i32
    return %arg0, %c0_i32 : i32, i32
  }
  func.func @transform_1(%arg0: i32) -> (i32, i32) {
    %c0_i32 = arith.constant 0 : i32
    %c0_i32_0 = arith.constant 0 : i32
    %c0_i32_1 = arith.constant 0 : i32
    return %c0_i32, %c0_i32_0 : i32, i32
  }
  func.func @transform_2(%arg0: i32) -> (i32, i32) {
    %c0_i32 = arith.constant 0 : i32
    %c0_i32_0 = arith.constant 0 : i32
    %c0_i32_1 = arith.constant 0 : i32
    return %c0_i32, %c0_i32_0 : i32, i32
  }
  func.func @transform_3(%arg0: i32) -> (i32, i32) {
    %c0_i32 = arith.constant 0 : i32
    %c0_i32_0 = arith.constant 0 : i32
    return %arg0, %c0_i32 : i32, i32
  }
}

</mosaic_0001>

<llo_original>
// kernel: tpu_custom_call.1
$region0: #{tpu_custom_call.1}
  #allocation0 [shape = 'u32[]', space=smem, size = 0x4, offset = 0x4, fixed_abs, tag = 'smem constant byte address 0x4 - core index']
  #allocation1 [shape = 'u32[144,128]{1,0:T(1,128)}', space=vmem, size = 0x12000, scoped, tag = 'internal scratch']
  %s0 = inlined_call_operand.hbm [shape: f32[4,128], index: 0, kind: input, shape index: {}]
  %s1 = inlined_call_operand.hbm [shape: f32[128,128], index: 1, kind: input, shape index: {}]
  %s2 = inlined_call_operand.vmem [shape: f32[1,128], index: 2, kind: input, shape index: {}]
  %s3 = inlined_call_operand.hbm [shape: f32[4,128], index: 3, kind: output, shape index: {}]
  %s4 = sld [smem:[#allocation0]]
  $region30: #{tpu_custom_call.1} parent=0
    _
  %s6 = ssub.s32 1, %s4
  %s7 = scalar_select 0, %s6, %s4
  $region1: #{tpu_custom_call.1} parent=0
    #allocation2 [shape = 'u8[2048]{0}', space=vmem, size = 0x800, scoped, tag = 'input window, operand 0, single buffered']
    #allocation3 [shape = 's32[1]{0}', space=sflag, size = 0x4, scoped, tag = 'scoped memory for tpu_custom_call.1']
    #allocation4 [shape = 's32[1]{0}', space=sflag, size = 0x4, scoped, tag = 'scoped memory for tpu_custom_call.1']
    #allocation5 [shape = 'u8[65536]{0}', space=vmem, size = 0x10000, scoped, tag = 'input window, operand 1, single buffered']
    #allocation6 [shape = 's32[1]{0}', space=sflag, size = 0x4, scoped, tag = 'scoped memory for tpu_custom_call.1']
    #allocation7 [shape = 'u8[2048]{0}', space=vmem, size = 0x800, scoped, tag = 'output window, operand 0, single buffered']
    %8 = vsyncpa [#allocation3], 0
    %9 = vsyncpa [#allocation6], 0
    %10 = vsyncpa [#allocation4], 0
    // Predicated region
    $region2: #{tpu_custom_call.1} parent=1 // pred_check
      _
    $region3: #{tpu_custom_call.1} parent=1 // pred_check_branch
      %12 = sbr.rel (0) target = $region5
    $region4: #{tpu_custom_call.1} parent=1 // pred_region
      %s14 = ssub.s32 64, 64
      %15 = vsyncadd [#allocation3], %s14
      %s17 = sshll.u32 [#allocation2], 4
      %s18 = int_to_ptr.vmem [resolvable:$true] %s17
      %20 = dma.hbm_to_vmem [thread:$0]  %s0, 64, %s18, [#allocation3]
    $region5: #{tpu_custom_call.1} parent=1 // pred_fallthru
      _
    // Predicated region
    $region6: #{tpu_custom_call.1} parent=1 // pred_check
      _
    $region7: #{tpu_custom_call.1} parent=1 // pred_check_branch
      %22 = sbr.rel (0) target = $region9
    $region8: #{tpu_custom_call.1} parent=1 // pred_region
      %s24 = ssub.s32 2048, 2048
      %25 = vsyncadd [#allocation6], %s24
      %s26 = sshll.u32 [#allocation5], 4
      %s27 = int_to_ptr.vmem [resolvable:$true] %s26
      %32 = dma.hbm_to_vmem [thread:$0]  %s1, 2048, %s27, [#allocation6], 128, 128, 8
    $region9: #{tpu_custom_call.1} parent=1 // pred_fallthru
      _
    // Predicated region
    $region10: #{tpu_custom_call.1} parent=1 // pred_check
      _
    $region11: #{tpu_custom_call.1} parent=1 // pred_check_branch
      %34 = sbr.rel (0) target = $region13
    $region12: #{tpu_custom_call.1} parent=1 // pred_region
      _
    $region13: #{tpu_custom_call.1} parent=1 // pred_fallthru
      _
    // Predicated region
    $region14: #{tpu_custom_call.1} parent=1 // pred_check
      _
    $region15: #{tpu_custom_call.1} parent=1 // pred_check_branch
      %36 = sbr.rel (0) target = $region17
    $region16: #{tpu_custom_call.1} parent=1 // pred_region
      %37 = dma.done [#allocation3], 64
    $region17: #{tpu_custom_call.1} parent=1 // pred_fallthru
      _
    // Predicated region
    $region18: #{tpu_custom_call.1} parent=1 // pred_check
      _
    $region19: #{tpu_custom_call.1} parent=1 // pred_check_branch
      %39 = sbr.rel (0) target = $region21
    $region20: #{tpu_custom_call.1} parent=1 // pred_region
      %40 = dma.done [#allocation6], 2048
    $region21: #{tpu_custom_call.1} parent=1 // pred_fallthru
      _
    %v41 = vld [vmem:[#allocation2] sm:$0xf]
    %v42 = vld [vmem:[#allocation5] sm:$0xff]
    %v43 = vld [vmem:[#allocation5 + $0x8] sm:$0xff]
    %v44 = vld [vmem:[#allocation5 + $0x10] sm:$0xff]
    %v45 = vld [vmem:[#allocation5 + $0x18] sm:$0xff]
    %v46 = vld [vmem:[#allocation5 + $0x20] sm:$0xff]
    %v47 = vld [vmem:[#allocation5 + $0x28] sm:$0xff]
    %v48 = vld [vmem:[#allocation5 + $0x30] sm:$0xff]
    %v49 = vld [vmem:[#allocation5 + $0x38] sm:$0xff]
    %v50 = vld [vmem:[#allocation5 + $0x40] sm:$0xff]
    %v51 = vld [vmem:[#allocation5 + $0x48] sm:$0xff]
    %v52 = vld [vmem:[#allocation5 + $0x50] sm:$0xff]
    %v53 = vld [vmem:[#allocation5 + $0x58] sm:$0xff]
    %v54 = vld [vmem:[#allocation5 + $0x60] sm:$0xff]
    %v55 = vld [vmem:[#allocation5 + $0x68] sm:$0xff]
    %v56 = vld [vmem:[#allocation5 + $0x70] sm:$0xff]
    %v57 = vld [vmem:[#allocation5 + $0x78] sm:$0xff]
    %v58 = vld [vmem:[%s2] sm:$0x1]
    %v60 = vlaneseq
    %v61 = vshrl.u32 %v60, 7
    %v62 = vsub.s32 0, %v61
    %v63 = vrot.slane %v58, %v62
    %65 = vmatprep.subr.mxu0 0.0
    %66 = vmatpush1.msra.mxu0 %v57
    %67 = vmatprep.subr.mxu0 0.0
    %68 = vmatpush1.msra.mxu0 %v56
    %69 = vmatprep.subr.mxu0 0.0
    %70 = vmatpush1.msra.mxu0 %v55
    %71 = vmatprep.subr.mxu0 0.0
    %72 = vmatpush1.msra.mxu0 %v54
    %73 = vmatprep.subr.mxu0 0.0
    %74 = vmatpush1.msra.mxu0 %v53
    %75 = vmatprep.subr.mxu0 0.0
    %76 = vmatpush1.msra.mxu0 %v52
    %77 = vmatprep.subr.mxu0 0.0
    %78 = vmatpush1.msra.mxu0 %v51
    %79 = vmatprep.subr.mxu0 0.0
    %80 = vmatpush1.msra.mxu0 %v50
    %81 = vmatprep.subr.mxu0 0.0
    %82 = vmatpush1.msra.mxu0 %v49
    %83 = vmatprep.subr.mxu0 0.0
    %84 = vmatpush1.msra.mxu0 %v48
    %85 = vmatprep.subr.mxu0 0.0
    %86 = vmatpush1.msra.mxu0 %v47
    %87 = vmatprep.subr.mxu0 0.0
    %88 = vmatpush1.msra.mxu0 %v46
    %89 = vmatprep.subr.mxu0 0.0
    %90 = vmatpush1.msra.mxu0 %v45
    %91 = vmatprep.subr.mxu0 0.0
    %92 = vmatpush1.msra.mxu0 %v44
    %93 = vmatprep.subr.mxu0 0.0
    %94 = vmatpush1.msra.mxu0 %v43
    %95 = vmatprep.subr.mxu0 0.0
    %96 = vmatpush1.msra.mxu0 %v42
    %97 = vmatprep.subr.mxu0 0.0
    %98 = vmatpush2.msra.mxu0 0.0
    %99 = vmatprep.subr.mxu0 0.0
    %100 = vmatpush2.msra.mxu0 0.0
    %101 = vmatprep.subr.mxu0 0.0
    %102 = vmatpush2.msra.mxu0 0.0
    %103 = vmatprep.subr.mxu0 0.0
    %104 = vmatpush2.msra.mxu0 0.0
    %105 = vmatprep.subr.mxu0 0.0
    %106 = vmatpush2.msra.mxu0 0.0
    %107 = vmatprep.subr.mxu0 0.0
    %108 = vmatpush2.msra.mxu0 0.0
    %109 = vmatprep.subr.mxu0 0.0
    %110 = vmatpush2.msra.mxu0 0.0
    %111 = vmatprep.subr.mxu0 0.0
    %112 = vmatpush2.msra.mxu0 0.0
    %113 = vmatprep.subr.mxu0 0.0
    %114 = vmatpush2.msra.mxu0 0.0
    %115 = vmatprep.subr.mxu0 0.0
    %116 = vmatpush2.msra.mxu0 0.0
    %117 = vmatprep.subr.mxu0 0.0
    %118 = vmatpush2.msra.mxu0 0.0
    %119 = vmatprep.subr.mxu0 0.0
    %120 = vmatpush2.msra.mxu0 0.0
    %121 = vmatprep.subr.mxu0 0.0
    %122 = vmatpush2.msra.mxu0 0.0
    %123 = vmatprep.subr.mxu0 0.0
    %124 = vmatpush2.msra.mxu0 0.0
    %125 = vmatprep.subr.mxu0 0.0
    %126 = vmatpush2.msra.mxu0 0.0
    %127 = vmatprep.subr.mxu0 0.0
    %128 = vmatpush2.msra.mxu0 0.0
    %129 = vmatprep.mubr.f32.mxu0 0.0
    %130 = vmatmul.mubr.f32.gmra.mxu0 %v41
    %v131 = vpop.f32.mrf.mxu0
    %v132 = vadd.f32 %v63, %v131
    %v133 = vpop.f32.mrf.mxu0
    %134 = vdwg.mxu0
    %135 = vst [vmem:[#allocation7] sm:$0xf] %v132
    // Predicated region
    $region22: #{tpu_custom_call.1} parent=1 // pred_check
      _
    $region23: #{tpu_custom_call.1} parent=1 // pred_check_branch
      %137 = sbr.rel (0) target = $region25
    $region24: #{tpu_custom_call.1} parent=1 // pred_region
      %s139 = ssub.s32 64, 64
      %140 = vsyncadd [#allocation4], %s139
      %s142 = sshll.u32 [#allocation7], 4
      %s143 = int_to_ptr.vmem [resolvable:$true] %s142
      %145 = dma.vmem_to_hbm [thread:$0]  %s143, 64, %s3, [#allocation4]
    $region25: #{tpu_custom_call.1} parent=1 // pred_fallthru
      _
    // Predicated region
    $region26: #{tpu_custom_call.1} parent=1 // pred_check
      _
    $region27: #{tpu_custom_call.1} parent=1 // pred_check_branch
      %147 = sbr.rel (0) target = $region29
    $region28: #{tpu_custom_call.1} parent=1 // pred_region
      %148 = dma.done [#allocation4], 64
    $region29: #{tpu_custom_call.1} parent=1 // pred_fallthru
      _
    %149 = vsyncpa [#allocation3], 1
    %150 = vsyncpa [#allocation6], 1
    %151 = vsyncpa [#allocation4], 1

// kernel: tpu_custom_call.1
$region0: #{tpu_custom_call.1}
  #allocation0 [shape = 'u32[]', space=smem, size = 0x4, offset = 0x4, fixed_abs, tag = 'smem constant byte address 0x4 - core index']
  #allocation1 [shape = 'u32[144,128]{1,0:T(1,128)}', space=vmem, size = 0x12000, scoped, tag = 'internal scratch']
  %s0 = inlined_call_operand.hbm [shape: f32[4,128], index: 0, kind: input, shape index: {}]
  %s1 = inlined_call_operand.hbm [shape: f32[128,128], index: 1, kind: input, shape index: {}]
  %s2 = inlined_call_operand.vmem [shape: f32[1,128], index: 2, kind: input, shape index: {}]
  %s3 = inlined_call_operand.hbm [shape: f32[4,128], index: 3, kind: output, shape index: {}]
  %s4 = sld [smem:[#allocation0]]
  $region30: #{tpu_custom_call.1} parent=0
    _
  %s6 = ssub.s32 1, %s4
  %s7 = scalar_select 0, %s6, %s4
  $region1: #{tpu_custom_call.1} parent=0
    #allocation2 [shape = 'u8[2048]{0}', space=vmem, size = 0x800, scoped, tag = 'input window, operand 0, single buffered']
    #allocation3 [shape = 's32[1]{0}', space=sflag, size = 0x4, scoped, tag = 'scoped memory for tpu_custom_call.1']
    #allocation4 [shape = 's32[1]{0}', space=sflag, size = 0x4, scoped, tag = 'scoped memory for tpu_custom_call.1']
    #allocation5 [shape = 'u8[65536]{0}', space=vmem, size = 0x10000, scoped, tag = 'input window, operand 1, single buffered']
    #allocation6 [shape = 's32[1]{0}', space=sflag, size = 0x4, scoped, tag = 'scoped memory for tpu_custom_call.1']
    #allocation7 [shape = 'u8[2048]{0}', space=vmem, size = 0x800, scoped, tag = 'output window, operand 0, single buffered']
    %8 = vsyncpa [#allocation3], 0
    %9 = vsyncpa [#allocation6], 0
    %10 = vsyncpa [#allocation4], 0
    // Predicated region
    $region2: #{tpu_custom_call.1} parent=1 // pred_check
      _
    $region3: #{tpu_custom_call.1} parent=1 // pred_check_branch
      %12 = sbr.rel (0) target = $region5
    $region4: #{tpu_custom_call.1} parent=1 // pred_region
      %s14 = ssub.s32 64, 64
      %15 = vsyncadd [#allocation3], %s14
      %s17 = sshll.u32 [#allocation2], 4
      %s18 = int_to_ptr.vmem [resolvable:$true] %s17
      %20 = dma.hbm_to_vmem [thread:$0]  %s0, 64, %s18, [#allocation3]
    $region5: #{tpu_custom_call.1} parent=1 // pred_fallthru
      _
    // Predicated region
    $region6: #{tpu_custom_call.1} parent=1 // pred_check
      _
    $region7: #{tpu_custom_call.1} parent=1 // pred_check_branch
      %22 = sbr.rel (0) target = $region9
    $region8: #{tpu_custom_call.1} parent=1 // pred_region
      %s24 = ssub.s32 2048, 2048
      %25 = vsyncadd [#allocation6], %s24
      %s26 = sshll.u32 [#allocation5], 4
      %s27 = int_to_ptr.vmem [resolvable:$true] %s26
      %32 = dma.hbm_to_vmem [thread:$0]  %s1, 2048, %s27, [#allocation6], 128, 128, 8
    $region9: #{tpu_custom_call.1} parent=1 // pred_fallthru
      _
    // Predicated region
    $region10: #{tpu_custom_call.1} parent=1 // pred_check
      _
    $region11: #{tpu_custom_call.1} parent=1 // pred_check_branch
      %34 = sbr.rel (0) target = $region13
    $region12: #{tpu_custom_call.1} parent=1 // pred_region
      _
    $region13: #{tpu_custom_call.1} parent=1 // pred_fallthru
      _
    // Predicated region
    $region14: #{tpu_custom_call.1} parent=1 // pred_check
      _
    $region15: #{tpu_custom_call.1} parent=1 // pred_check_branch
      %36 = sbr.rel (0) target = $region17
    $region16: #{tpu_custom_call.1} parent=1 // pred_region
      %37 = dma.done [#allocation3], 64
    $region17: #{tpu_custom_call.1} parent=1 // pred_fallthru
      _
    // Predicated region
    $region18: #{tpu_custom_call.1} parent=1 // pred_check
      _
    $region19: #{tpu_custom_call.1} parent=1 // pred_check_branch
      %39 = sbr.rel (0) target = $region21
    $region20: #{tpu_custom_call.1} parent=1 // pred_region
      %40 = dma.done [#allocation6], 2048
    $region21: #{tpu_custom_call.1} parent=1 // pred_fallthru
      _
    %v41 = vld [vmem:[#allocation2] sm:$0xf]
    %v42 = vld [vmem:[#allocation5] sm:$0xff]
    %v43 = vld [vmem:[#allocation5 + $0x8] sm:$0xff]
    %v44 = vld [vmem:[#allocation5 + $0x10] sm:$0xff]
    %v45 = vld [vmem:[#allocation5 + $0x18] sm:$0xff]
    %v46 = vld [vmem:[#allocation5 + $0x20] sm:$0xff]
    %v47 = vld [vmem:[#allocation5 + $0x28] sm:$0xff]
    %v48 = vld [vmem:[#allocation5 + $0x30] sm:$0xff]
    %v49 = vld [vmem:[#allocation5 + $0x38] sm:$0xff]
    %v50 = vld [vmem:[#allocation5 + $0x40] sm:$0xff]
    %v51 = vld [vmem:[#allocation5 + $0x48] sm:$0xff]
    %v52 = vld [vmem:[#allocation5 + $0x50] sm:$0xff]
    %v53 = vld [vmem:[#allocation5 + $0x58] sm:$0xff]
    %v54 = vld [vmem:[#allocation5 + $0x60] sm:$0xff]
    %v55 = vld [vmem:[#allocation5 + $0x68] sm:$0xff]
    %v56 = vld [vmem:[#allocation5 + $0x70] sm:$0xff]
    %v57 = vld [vmem:[#allocation5 + $0x78] sm:$0xff]
    %v58 = vld [vmem:[%s2] sm:$0x1]
    %v60 = vlaneseq
    %v61 = vshrl.u32 %v60, 7
    %v62 = vsub.s32 0, %v61
    %v63 = vrot.slane %v58, %v62
    %65 = vmatprep.subr.mxu0 0.0
    %66 = vmatpush1.msra.mxu0 %v57
    %67 = vmatprep.subr.mxu0 0.0
    %68 = vmatpush1.msra.mxu0 %v56
    %69 = vmatprep.subr.mxu0 0.0
    %70 = vmatpush1.msra.mxu0 %v55
    %71 = vmatprep.subr.mxu0 0.0
    %72 = vmatpush1.msra.mxu0 %v54
    %73 = vmatprep.subr.mxu0 0.0
    %74 = vmatpush1.msra.mxu0 %v53
    %75 = vmatprep.subr.mxu0 0.0
    %76 = vmatpush1.msra.mxu0 %v52
    %77 = vmatprep.subr.mxu0 0.0
    %78 = vmatpush1.msra.mxu0 %v51
    %79 = vmatprep.subr.mxu0 0.0
    %80 = vmatpush1.msra.mxu0 %v50
    %81 = vmatprep.subr.mxu0 0.0
    %82 = vmatpush1.msra.mxu0 %v49
    %83 = vmatprep.subr.mxu0 0.0
    %84 = vmatpush1.msra.mxu0 %v48
    %85 = vmatprep.subr.mxu0 0.0
    %86 = vmatpush1.msra.mxu0 %v47
    %87 = vmatprep.subr.mxu0 0.0
    %88 = vmatpush1.msra.mxu0 %v46
    %89 = vmatprep.subr.mxu0 0.0
    %90 = vmatpush1.msra.mxu0 %v45
    %91 = vmatprep.subr.mxu0 0.0
    %92 = vmatpush1.msra.mxu0 %v44
    %93 = vmatprep.subr.mxu0 0.0
    %94 = vmatpush1.msra.mxu0 %v43
    %95 = vmatprep.subr.mxu0 0.0
    %96 = vmatpush1.msra.mxu0 %v42
    %97 = vmatprep.subr.mxu0 0.0
    %98 = vmatpush2.msra.mxu0 0.0
    %99 = vmatprep.subr.mxu0 0.0
    %100 = vmatpush2.msra.mxu0 0.0
    %101 = vmatprep.subr.mxu0 0.0
    %102 = vmatpush2.msra.mxu0 0.0
    %103 = vmatprep.subr.mxu0 0.0
    %104 = vmatpush2.msra.mxu0 0.0
    %105 = vmatprep.subr.mxu0 0.0
    %106 = vmatpush2.msra.mxu0 0.0
    %107 = vmatprep.subr.mxu0 0.0
    %108 = vmatpush2.msra.mxu0 0.0
    %109 = vmatprep.subr.mxu0 0.0
    %110 = vmatpush2.msra.mxu0 0.0
    %111 = vmatprep.subr.mxu0 0.0
    %112 = vmatpush2.msra.mxu0 0.0
    %113 = vmatprep.subr.mxu0 0.0
    %114 = vmatpush2.msra.mxu0 0.0
    %115 = vmatprep.subr.mxu0 0.0
    %116 = vmatpush2.msra.mxu0 0.0
    %117 = vmatprep.subr.mxu0 0.0
    %118 = vmatpush2.msra.mxu0 0.0
    %119 = vmatprep.subr.mxu0 0.0
    %120 = vmatpush2.msra.mxu0 0.0
    %121 = vmatprep.subr.mxu0 0.0
    %122 = vmatpush2.msra.mxu0 0.0
    %123 = vmatprep.subr.mxu0 0.0
    %124 = vmatpush2.msra.mxu0 0.0
    %125 = vmatprep.subr.mxu0 0.0
    %126 = vmatpush2.msra.mxu0 0.0
    %127 = vmatprep.subr.mxu0 0.0
    %128 = vmatpush2.msra.mxu0 0.0
    %129 = vmatprep.mubr.f32.mxu0 0.0
    %130 = vmatmul.mubr.f32.gmra.mxu0 %v41
    %v131 = vpop.f32.mrf.mxu0
    %v132 = vadd.f32 %v63, %v131
    %v133 = vpop.f32.mrf.mxu0
    %134 = vdwg.mxu0
    %135 = vst [vmem:[#allocation7] sm:$0xf] %v132
    // Predicated region
    $region22: #{tpu_custom_call.1} parent=1 // pred_check
      _
    $region23: #{tpu_custom_call.1} parent=1 // pred_check_branch
      %137 = sbr.rel (0) target = $region25
    $region24: #{tpu_custom_call.1} parent=1 // pred_region
      %s139 = ssub.s32 64, 64
      %140 = vsyncadd [#allocation4], %s139
      %s142 = sshll.u32 [#allocation7], 4
      %s143 = int_to_ptr.vmem [resolvable:$true] %s142
      %145 = dma.vmem_to_hbm [thread:$0]  %s143, 64, %s3, [#allocation4]
    $region25: #{tpu_custom_call.1} parent=1 // pred_fallthru
      _
    // Predicated region
    $region26: #{tpu_custom_call.1} parent=1 // pred_check
      _
    $region27: #{tpu_custom_call.1} parent=1 // pred_check_branch
      %147 = sbr.rel (0) target = $region29
    $region28: #{tpu_custom_call.1} parent=1 // pred_region
      %148 = dma.done [#allocation4], 64
    $region29: #{tpu_custom_call.1} parent=1 // pred_fallthru
      _
    %149 = vsyncpa [#allocation3], 1
    %150 = vsyncpa [#allocation6], 1
    %151 = vsyncpa [#allocation4], 1

</llo_original>
